<compile_context>
chip_gen: v7x
topology: tpu7x:2x2x1
jax: 0.10.0
libtpu: 0.0.40
codegen_flags: <defaults>
</compile_context>

<pallas_src>
import functools
import math

import jax
import jax.numpy as jnp
from jax.experimental import pallas as pl
from jax.experimental.pallas import tpu as pltpu

_VMEM_LIMIT = 48 * 1024 * 1024        # headroom under v7x's 64 MiB physical VMEM
_FUSED_SLAB_CAP = 6 * 1024 * 1024     # max bytes of x per fused block (in+out double buffered)
_TILE_BYTE_BUDGET = 6 * 1024 * 1024   # spatial tile budget for the two-pass fallback


def _eca_kernel_size(c, b=1, gamma=2):
    """k of the ECA Conv1d, exactly as in the PyTorch module (defaults b=1, gamma=2)."""
    t = int(abs((math.log(c, 2) + b) / gamma))
    return t if t % 2 else t + 1


def _hsigmoid(x):
    return jnp.clip(x + 3.0, 0.0, 6.0) * (1.0 / 6.0)


def _channel_conv1d(mean, w_ref, k, pad):
    """k-tap Conv1d (padding=k//2, no bias) over the channel (lane) axis of (BN, C)."""
    C = mean.shape[1]
    c_idx = jax.lax.broadcasted_iota(jnp.int32, mean.shape, 1)
    pre = jnp.zeros_like(mean)
    for j in range(k):                       # k <= 7: unrolled scalar-weighted adds (VPU/XLU)
        d = j - pad
        wj = w_ref[j]                        # SMEM scalar
        if d == 0:
            tap = mean
        else:
            rolled = pltpu.roll(mean, shift=(-d) % C, axis=1)   # rolled[c] = mean[c + d]
            valid = (c_idx + d >= 0) & (c_idx + d < C)
            tap = jnp.where(valid, rolled, 0.0)
        pre = pre + wj * tap
    return pre


# ---------------------------------------------------------------------------
# Fused kernel: pool + conv + hsigmoid + rescale in one pass (x read once).
# grid = (N // BN,); block = (BN, C, S).
# ---------------------------------------------------------------------------
def _eca_fused_kernel(w_ref, x_ref, o_ref, *, k, pad, inv_S):
    xf = x_ref[...].astype(jnp.float32)                  # (BN, C, S)
    mean = jnp.sum(xf, axis=2) * inv_S                   # adaptive avg pool -> (BN, C)
    pre = _channel_conv1d(mean, w_ref, k, pad)           # Conv1d over channels
    att = _hsigmoid(pre)                                 # (BN, C)
    o_ref[...] = (xf * att[:, :, None]).astype(o_ref.dtype)


# ---------------------------------------------------------------------------
# Fallback kernel A: spatial (lane) reduction -> per-channel sums.
# grid = (N, spatial_tiles); output block resident across the reduction axis.
# ---------------------------------------------------------------------------
def _pool_sum_kernel(x_ref, sum_ref, *, S, TS, need_mask):
    s = pl.program_id(1)
    last = pl.num_programs(1) - 1

    @pl.when(s == 0)
    def _init():
        sum_ref[...] = jnp.zeros_like(sum_ref)

    if need_mask:
        # Mask only the ragged last tile; unmasked adds on the common path.
        @pl.when(s < last)
        def _body():
            sum_ref[...] += jnp.sum(x_ref[...].astype(jnp.float32), axis=2, keepdims=True)

        @pl.when(s == last)
        def _tail():
            blk = x_ref[...].astype(jnp.float32)
            col = jax.lax.broadcasted_iota(jnp.int32, blk.shape, 2) + s * TS
            blk = jnp.where(col < S, blk, 0.0)
            sum_ref[...] += jnp.sum(blk, axis=2, keepdims=True)
    else:
        sum_ref[...] += jnp.sum(x_ref[...].astype(jnp.float32), axis=2, keepdims=True)


# ---------------------------------------------------------------------------
# Fallback kernel B: out = x * att (att broadcast along the spatial lane axis).
# ---------------------------------------------------------------------------
def _scale_kernel(x_ref, att_ref, o_ref):
    o_ref[...] = (x_ref[...].astype(jnp.float32) * att_ref[...]).astype(o_ref.dtype)


# ---------------------------------------------------------------------------
# Wrapper
# ---------------------------------------------------------------------------
def eca_attention(x_nchw, conv_w, *,
                  fused_slab_cap=_FUSED_SLAB_CAP,
                  spatial_tile_budget=_TILE_BYTE_BUDGET):
    """ECA attention forward.  x_nchw: (N, C, H, W); conv_w: (1, 1, k) PyTorch Conv1d weight."""
    N, C, H, W = x_nchw.shape
    S = H * W
    w = conv_w.reshape(-1).astype(jnp.float32)
    k = int(w.shape[0])
    pad = k // 2

    # View as (N, C, S): spatial on lanes, zero-cost from NCHW.
    x3 = x_nchw.reshape(N, C, S)
    itemsize = jnp.dtype(x_nchw.dtype).itemsize
    slab_bytes = C * S * itemsize

    if 0 < slab_bytes <= fused_slab_cap:
        # ---------------- fused single pass ----------------
        # Fold batch rows into one block (>= MiB-scale, lane dense) under the cap.
        BN = 1
        for d in range(1, N + 1):
            if N % d == 0 and d * slab_bytes <= fused_slab_cap:
                BN = d
        if N > 1 and BN == N:
            # Keep >= 2 grid steps so v7x's second TensorCore has work.
            for d in range(N // 2, 0, -1):
                if N % d == 0:
                    BN = d
                    break

        out = pl.pallas_call(
            functools.partial(_eca_fused_kernel, k=k, pad=pad, inv_S=1.0 / S),
            out_shape=jax.ShapeDtypeStruct((N, C, S), x_nchw.dtype),
            grid=(N // BN,),
            in_specs=[pl.BlockSpec(memory_space=pltpu.MemorySpace.SMEM),  # conv taps
                      pl.BlockSpec((BN, C, S), lambda b: (b, 0, 0))],
            out_specs=pl.BlockSpec((BN, C, S), lambda b: (b, 0, 0)),
            compiler_params=pltpu.CompilerParams(
                dimension_semantics=("parallel",),
                vmem_limit_bytes=_VMEM_LIMIT),
        )(w, x3)
        return out.reshape(N, C, H, W)

    # ---------------- two-pass fallback (very large spatial slabs) ----------------
    ts_cap = max(128, (spatial_tile_budget // (C * itemsize)) // 128 * 128)
    TS = S if S <= ts_cap else ts_cap
    nst = pl.cdiv(S, TS)
    need_mask = (S % TS) != 0

    # Pass 1: tiled, pipelined spatial reduction -> per-channel sums.
    sums = pl.pallas_call(
        functools.partial(_pool_sum_kernel, S=S, TS=TS, need_mask=need_mask),
        out_shape=jax.ShapeDtypeStruct((N, C, 1), jnp.float32),
        grid=(N, nst),
        in_specs=[pl.BlockSpec((1, C, TS), lambda n, s: (n, 0, s))],
        out_specs=pl.BlockSpec((1, C, 1), lambda n, s: (n, 0, 0)),
        compiler_params=pltpu.CompilerParams(
            dimension_semantics=("parallel", "arbitrary"),
            vmem_limit_bytes=_VMEM_LIMIT),
    )(x3)

    # Tiny (N, C) conv + hsigmoid in plain JAX (no band matrix, negligible cost).
    mean = sums[:, :, 0] * (1.0 / S)
    mean_p = jnp.pad(mean, ((0, 0), (pad, pad)))
    pre = w[0] * mean_p[:, 0:C]
    for j in range(1, k):
        pre = pre + w[j] * mean_p[:, j:j + C]
    att = _hsigmoid(pre)[:, :, None]                     # (N, C, 1) f32

    # Pass 2: fully parallel elementwise rescale.
    out = pl.pallas_call(
        _scale_kernel,
        out_shape=jax.ShapeDtypeStruct((N, C, S), x_nchw.dtype),
        grid=(N, nst),
        in_specs=[pl.BlockSpec((1, C, TS), lambda n, s: (n, 0, s)),
                  pl.BlockSpec((1, C, 1), lambda n, s: (n, 0, 0))],
        out_specs=pl.BlockSpec((1, C, TS), lambda n, s: (n, 0, s)),
        compiler_params=pltpu.CompilerParams(
            dimension_semantics=("parallel", "parallel"),
            vmem_limit_bytes=_VMEM_LIMIT),
    )(x3, att)
    return out.reshape(N, C, H, W)


# ---------------------------------------------------------------------------
# Pure-JAX reference (matches the PyTorch module semantics)
# ---------------------------------------------------------------------------
def eca_reference(x, conv_w):
    N, C, H, W = x.shape
    w = conv_w.reshape(-1).astype(jnp.float32)
    k = w.shape[0]
    pad = k // 2
    y = jnp.mean(x.astype(jnp.float32), axis=(2, 3))            # (N, C)
    yp = jnp.pad(y, ((0, 0), (pad, pad)))
    pre = sum(w[j] * yp[:, j:j + C] for j in range(k))          # Conv1d, no bias
    att = _hsigmoid(pre)
    return (x.astype(jnp.float32) * att[:, :, None, None]).astype(x.dtype)


if __name__ == "__main__":
    key = jax.random.PRNGKey(0)
    kx, kw, kx2 = jax.random.split(key, 3)

    # Small shapes consistent with the module: C=32 -> k=3, padding=1.
    N, C, H, W = 2, 32, 16, 16
    x = jax.random.normal(kx, (N, C, H, W), jnp.float32)

    k = _eca_kernel_size(C)
    bound = 1.0 / math.sqrt(k)                                  # PyTorch Conv1d init range
    conv_w = jax.random.uniform(kw, (1, 1, k), jnp.float32, -bound, bound)

    # Primary (fused single-pass) path.
    out = jax.block_until_ready(jax.jit(eca_attention)(x, conv_w))
    assert out.shape == x.shape, out.shape
    assert bool(jnp.all(jnp.isfinite(out))), "non-finite output"
    ref = eca_reference(x, conv_w)
    max_err = float(jnp.max(jnp.abs(out - ref)))
    assert max_err < 5e-3, f"fused path max abs err vs reference: {max_err}"

    # Also exercise the two-pass fallback with a ragged last spatial tile (S=144, TS=128).
    x2 = jax.random.normal(kx2, (2, 32, 12, 12), jnp.float32)
    two_pass = functools.partial(eca_attention, fused_slab_cap=0,
                                 spatial_tile_budget=32 * 128 * 4)
    out2 = jax.block_until_ready(jax.jit(two_pass)(x2, conv_w))
    ref2 = eca_reference(x2, conv_w)
    max_err2 = float(jnp.max(jnp.abs(out2 - ref2)))
    assert max_err2 < 5e-3, f"fallback path max abs err vs reference: {max_err2}"

    print("KERNEL_OK")
</pallas_src>

<mosaic_0001>
module attributes {stable_mosaic.version = 11 : i64} {
  func.func @_eca_fused_kernel(%arg0: i32, %arg1: memref<3xf32, #tpu.memory_space<smem>>, %arg2: memref<1x32x256xf32, #tpu.memory_space<vmem>>, %arg3: memref<1x32x256xf32, #tpu.memory_space<vmem>>) attributes {dimension_semantics = [#tpu.dimension_semantics<parallel>], iteration_bounds = array<i64: 2>, scalar_prefetch = 0 : i64, scratch_operands = 0 : i64, tpu.core_type = #tpu.core_type<tc>, window_params = [{transform_indices = @transform_0, window_bounds = array<i64: 3>}, {transform_indices = @transform_1, window_bounds = array<i64: 1, 32, 256>}, {transform_indices = @transform_2, window_bounds = array<i64: 1, 32, 256>}]} {
    %c0 = arith.constant 0 : index
    %c0_0 = arith.constant 0 : index
    %c0_1 = arith.constant 0 : index
    %0 = vector.load %arg2[%c0, %c0_0, %c0_1] : memref<1x32x256xf32, #tpu.memory_space<vmem>>, vector<1x32x256xf32>
    %cst = arith.constant dense<0.000000e+00> : vector<1x32xf32>
    %1 = vector.multi_reduction <add>, %0, %cst [2] : vector<1x32x256xf32> to vector<1x32xf32>
    %cst_2 = arith.constant 3.906250e-03 : f32
    %2 = vector.broadcast %cst_2 : f32 to vector<1x32xf32>
    %3 = arith.mulf %1, %2 : vector<1x32xf32>
    %4 = tpu.iota {dimensions = array<i32: 1>} : vector<1x32xi32>
    %cst_3 = arith.constant 0.000000e+00 : f32
    %5 = vector.broadcast %cst_3 : f32 to vector<1x32xf32>
    %c0_4 = arith.constant 0 : index
    %6 = memref.load %arg1[%c0_4] : memref<3xf32, #tpu.memory_space<smem>>
    %c1_i32 = arith.constant 1 : i32
    %7 = tpu.dynamic_rotate %3 by %c1_i32 dim 1 : vector<1x32xf32>, i32 -> vector<1x32xf32>
    %c-1_i32 = arith.constant -1 : i32
    %8 = vector.broadcast %c-1_i32 : i32 to vector<1x32xi32>
    %9 = arith.addi %4, %8 : vector<1x32xi32>
    %c0_i32 = arith.constant 0 : i32
    %10 = vector.broadcast %c0_i32 : i32 to vector<1x32xi32>
    %11 = arith.cmpi sge, %9, %10 : vector<1x32xi32>
    %c-1_i32_5 = arith.constant -1 : i32
    %12 = vector.broadcast %c-1_i32_5 : i32 to vector<1x32xi32>
    %13 = arith.addi %4, %12 : vector<1x32xi32>
    %c32_i32 = arith.constant 32 : i32
    %14 = vector.broadcast %c32_i32 : i32 to vector<1x32xi32>
    %15 = arith.cmpi slt, %13, %14 : vector<1x32xi32>
    %16 = arith.andi %11, %15 : vector<1x32xi1>
    %cst_6 = arith.constant 0.000000e+00 : f32
    %17 = vector.broadcast %cst_6 : f32 to vector<1x32xf32>
    %18 = arith.select %16, %7, %17 : vector<1x32xi1>, vector<1x32xf32>
    %19 = vector.broadcast %6 : f32 to vector<1x32xf32>
    %20 = arith.mulf %19, %18 : vector<1x32xf32>
    %21 = arith.addf %5, %20 : vector<1x32xf32>
    %c1 = arith.constant 1 : index
    %22 = memref.load %arg1[%c1] : memref<3xf32, #tpu.memory_space<smem>>
    %23 = vector.broadcast %22 : f32 to vector<1x32xf32>
    %24 = arith.mulf %23, %3 : vector<1x32xf32>
    %25 = arith.addf %21, %24 : vector<1x32xf32>
    %c2 = arith.constant 2 : index
    %26 = memref.load %arg1[%c2] : memref<3xf32, #tpu.memory_space<smem>>
    %c31_i32 = arith.constant 31 : i32
    %27 = tpu.dynamic_rotate %3 by %c31_i32 dim 1 : vector<1x32xf32>, i32 -> vector<1x32xf32>
    %c1_i32_7 = arith.constant 1 : i32
    %28 = vector.broadcast %c1_i32_7 : i32 to vector<1x32xi32>
    %29 = arith.addi %4, %28 : vector<1x32xi32>
    %c0_i32_8 = arith.constant 0 : i32
    %30 = vector.broadcast %c0_i32_8 : i32 to vector<1x32xi32>
    %31 = arith.cmpi sge, %29, %30 : vector<1x32xi32>
    %c1_i32_9 = arith.constant 1 : i32
    %32 = vector.broadcast %c1_i32_9 : i32 to vector<1x32xi32>
    %33 = arith.addi %4, %32 : vector<1x32xi32>
    %c32_i32_10 = arith.constant 32 : i32
    %34 = vector.broadcast %c32_i32_10 : i32 to vector<1x32xi32>
    %35 = arith.cmpi slt, %33, %34 : vector<1x32xi32>
    %36 = arith.andi %31, %35 : vector<1x32xi1>
    %cst_11 = arith.constant 0.000000e+00 : f32
    %37 = vector.broadcast %cst_11 : f32 to vector<1x32xf32>
    %38 = arith.select %36, %27, %37 : vector<1x32xi1>, vector<1x32xf32>
    %39 = vector.broadcast %26 : f32 to vector<1x32xf32>
    %40 = arith.mulf %39, %38 : vector<1x32xf32>
    %41 = arith.addf %25, %40 : vector<1x32xf32>
    %cst_12 = arith.constant 3.000000e+00 : f32
    %42 = vector.broadcast %cst_12 : f32 to vector<1x32xf32>
    %43 = arith.addf %41, %42 : vector<1x32xf32>
    %cst_13 = arith.constant 0.000000e+00 : f32
    %cst_14 = arith.constant 6.000000e+00 : f32
    %44 = vector.broadcast %cst_13 : f32 to vector<1x32xf32>
    %45 = arith.maximumf %44, %43 : vector<1x32xf32>
    %46 = vector.broadcast %cst_14 : f32 to vector<1x32xf32>
    %47 = arith.minimumf %46, %45 : vector<1x32xf32>
    %cst_15 = arith.constant 0.166666672 : f32
    %48 = vector.broadcast %cst_15 : f32 to vector<1x32xf32>
    %49 = arith.mulf %47, %48 : vector<1x32xf32>
    %50 = vector.shape_cast %49 : vector<1x32xf32> to vector<1x32x1xf32>
    %51 = vector.broadcast %50 : vector<1x32x1xf32> to vector<1x32x256xf32>
    %52 = arith.mulf %0, %51 : vector<1x32x256xf32>
    %c0_16 = arith.constant 0 : index
    %c0_17 = arith.constant 0 : index
    %c0_18 = arith.constant 0 : index
    %53 = vector.load %arg3[%c0_16, %c0_17, %c0_18] : memref<1x32x256xf32, #tpu.memory_space<vmem>>, vector<1x32x256xf32>
    tpu.vector_store %arg3[%c0_16, %c0_17, %c0_18], %52 {strides = array<i32>} : memref<1x32x256xf32, #tpu.memory_space<vmem>>, vector<1x32x256xf32>,
    return
  }
  func.func @transform_0(%arg0: i32) -> i32 {
    %c0_i32 = arith.constant 0 : i32
    %c0_i32_0 = arith.constant 0 : i32
    return %c0_i32 : i32
  }
  func.func @transform_1(%arg0: i32) -> (i32, i32, i32) {
    %c0_i32 = arith.constant 0 : i32
    %c0_i32_0 = arith.constant 0 : i32
    %c0_i32_1 = arith.constant 0 : i32
    return %arg0, %c0_i32, %c0_i32_0 : i32, i32, i32
  }
  func.func @transform_2(%arg0: i32) -> (i32, i32, i32) {
    %c0_i32 = arith.constant 0 : i32
    %c0_i32_0 = arith.constant 0 : i32
    %c0_i32_1 = arith.constant 0 : i32
    return %arg0, %c0_i32, %c0_i32_0 : i32, i32, i32
  }
}

</mosaic_0001>

<llo_original>
// kernel: eca_attention.1
$region0: #{eca_attention.1}
  #allocation0 [shape = 'u32[]', space=smem, size = 0x4, offset = 0x4, fixed_abs, tag = 'smem constant byte address 0x4 - core index']
  #allocation1 [shape = 'u32[144,128]{1,0:T(1,128)}', space=vmem, size = 0x12000, scoped, tag = 'internal scratch']
  %s0 = inlined_call_operand.vmem [shape: f32[3], index: 0, kind: input, shape index: {}]
  %s1 = inlined_call_operand.vmem [shape: f32[2,32,256], index: 1, kind: input, shape index: {}]
  %s2 = inlined_call_operand.vmem [shape: f32[2,32,256], index: 2, kind: output, shape index: {}]
  %s3 = sld [smem:[#allocation0]]
  $region45: #{eca_attention.1} parent=0
    _
  %s5 = ssub.s32 1, %s3
  %s6 = scalar_select 0, %s5, %s3
  $region1: #{eca_attention.1} parent=0
    #allocation2 [shape = 'u8[512]{0}', space=smem, size = 0x200, scoped, tag = 'input window, operand 0, single buffered']
    #allocation3 [shape = 's32[2]{0}', space=sflag, size = 0x8, scoped, tag = 'scoped memory for eca_attention.1']
    %7 = vsyncpa [#allocation3], 0
    loop: start=0, step=1, limit=4
    $region2: #{eca_attention.1} parent=1 // loop_pre_header
      _
    $region3: #{eca_attention.1} parent=1 // loop_header
      %s9 = sphi 0, %s13
      %p10 = scmp.ge.s32.totalorder %s9, 4
      %s17 = sphi 0, %s17
      %s19 = sphi 0, %s17
      %s20 = sphi 0, %s19
      %s34 = sphi 0, %s20
      %s40 = sphi 0, %s42
      %s43 = sphi 0, %s40
      %s44 = sphi 0, %s43
      %s60 = sphi 0, %s44
      %s66 = sphi 0, %s68
      %s69 = sphi 0, %s66
      %s70 = sphi 0, %s69
      %s86 = sphi 0, %s70
    $region4: #{eca_attention.1} parent=1 // loop_header_branch
      %12 = sbr.rel (%p10) target = $region8
    $region5: #{eca_attention.1} parent=1 // loop_body
      %s14 = ssub.s32 %s9, 1
      %s15 = ssub.s32 %s9, 2
      %s16 = sadd.s32 %s9, 1
      %s18 = sadd.s32 %s17, 1
      %p21 = scmp.eq.s32.totalorder %s9, 1
      %p22 = scmp.ne.s32.totalorder %s17, %s19
      %p23 = scmp.eq.s32.totalorder %s9, 0
      %p24 = por %p22, %p23
      %p25 = scmp.ne.s32.totalorder %s17, %s19
      %p26 = scmp.eq.s32.totalorder %s14, 1
      %p27 = por %p25, %p26
      %p28 = scmp.ne.s32.totalorder %s19, %s20
      %p29 = scmp.eq.s32.totalorder %s14, 0
      %p30 = por %p28, %p29
      %p31 = scmp.ne.s32.totalorder %s19, %s20
      %p32 = scmp.eq.s32.totalorder %s15, 1
      %p33 = por %p31, %p32
      %p35 = scmp.ne.s32.totalorder %s20, %s34
      %p36 = scmp.eq.s32.totalorder %s15, 0
      %p37 = por %p35, %p36
      %s38 = ssub.s32 %s9, %s16
      %p39 = scmp.eq.s32.totalorder %s38, 0
      %s41 = sadd.s32 %s40, 1
      %s42 = scalar_select %p39, %s40, %s41
      %p45 = pneg %p39
      %p46 = scmp.eq.s32.totalorder %s9, 1
      %p47 = por %p45, %p46
      %p48 = scmp.ne.s32.totalorder %s40, %s43
      %p49 = scmp.eq.s32.totalorder %s9, 0
      %p50 = por %p48, %p49
      %p51 = scmp.ne.s32.totalorder %s40, %s43
      %p52 = scmp.eq.s32.totalorder %s14, 1
      %p53 = por %p51, %p52
      %p54 = scmp.ne.s32.totalorder %s43, %s44
      %p55 = scmp.eq.s32.totalorder %s14, 0
      %p56 = por %p54, %p55
      %p57 = scmp.ne.s32.totalorder %s43, %s44
      %p58 = scmp.eq.s32.totalorder %s15, 1
      %p59 = por %p57, %p58
      %p61 = scmp.ne.s32.totalorder %s44, %s60
      %p62 = scmp.eq.s32.totalorder %s15, 0
      %p63 = por %p61, %p62
      %s64 = ssub.s32 %s9, %s16
      %p65 = scmp.eq.s32.totalorder %s64, 0
      %s67 = sadd.s32 %s66, 1
      %s68 = scalar_select %p65, %s66, %s67
      %p71 = pneg %p65
      %p72 = scmp.eq.s32.totalorder %s9, 1
      %p73 = por %p71, %p72
      %p74 = scmp.ne.s32.totalorder %s66, %s69
      %p75 = scmp.eq.s32.totalorder %s9, 0
      %p76 = por %p74, %p75
      %p77 = scmp.ne.s32.totalorder %s66, %s69
      %p78 = scmp.eq.s32.totalorder %s14, 1
      %p79 = por %p77, %p78
      %p80 = scmp.ne.s32.totalorder %s69, %s70
      %p81 = scmp.eq.s32.totalorder %s14, 0
      %p82 = por %p80, %p81
      %p83 = scmp.ne.s32.totalorder %s69, %s70
      %p84 = scmp.eq.s32.totalorder %s15, 1
      %p85 = por %p83, %p84
      %p87 = scmp.ne.s32.totalorder %s70, %s86
      %p88 = scmp.eq.s32.totalorder %s15, 0
      %p89 = por %p87, %p88
      %p90 = scmp.le.s32.totalorder 1, %s9
      %p91 = scmp.lt.s32.totalorder %s9, 3
      %p92 = pnand %p90, %p91
      %p93 = pneg %p92
      // Predicated region
      $region9: #{eca_attention.1} parent=5 // pred_check
        _
      $region10: #{eca_attention.1} parent=5 // pred_check_branch
        %95 = sbr.rel (%p92) target = $region12
      $region11: #{eca_attention.1} parent=5 // pred_region
        %s96 = ssub.s32 %s9, 1
        // Predicated region
        $region13: #{eca_attention.1} parent=11 // pred_check
          %p97 = pneg %p30
        $region14: #{eca_attention.1} parent=11 // pred_check_branch
          %99 = sbr.rel (%p97) target = $region16
        $region15: #{eca_attention.1} parent=11 // pred_region
          %s101 = ssub.s32 16, 16
          %102 = vsyncadd [#allocation3], %s101
          %s104 = sshll.u32 %s0, 4
          %s105 = int_to_ptr.vmem [resolvable:$true] %s104
          %107 = dma.vmem_to_smem %s105, 16, [#allocation2], [#allocation3]
        $region16: #{eca_attention.1} parent=11 // pred_fallthru
          _
      $region12: #{eca_attention.1} parent=5 // pred_fallthru
        _
      %p108 = scmp.lt.s32.totalorder %s9, 2
      // Predicated region
      $region17: #{eca_attention.1} parent=5 // pred_check
        %p109 = pneg %p108
      $region18: #{eca_attention.1} parent=5 // pred_check_branch
        %111 = sbr.rel (%p109) target = $region20
      $region19: #{eca_attention.1} parent=5 // pred_region
        // Predicated region
        $region21: #{eca_attention.1} parent=19 // pred_check
          %p112 = pneg %p50
        $region22: #{eca_attention.1} parent=19 // pred_check_branch
          %114 = sbr.rel (%p112) target = $region24
        $region23: #{eca_attention.1} parent=19 // pred_region
          %p115 = scmp.lt.s32.totalorder %s9, 1
          %s116 = scalar_select %p115, %s9, 1
          %s117 = smul.addr %s116, 8
          %s118 = smul.addr %s117, 8
          %s119 = scalar_lea.vmem %s1, %s118
        $region24: #{eca_attention.1} parent=19 // pred_fallthru
          _
      $region20: #{eca_attention.1} parent=5 // pred_fallthru
        _
      %p120 = scmp.le.s32.totalorder 1, %s9
      %p121 = scmp.lt.s32.totalorder %s9, 3
      %p122 = pnand %p120, %p121
      %p123 = pneg %p122
      // Predicated region
      $region25: #{eca_attention.1} parent=5 // pred_check
        _
      $region26: #{eca_attention.1} parent=5 // pred_check_branch
        %125 = sbr.rel (%p122) target = $region28
      $region27: #{eca_attention.1} parent=5 // pred_region
        %s126 = ssub.s32 %s9, 1
        // Predicated region
        $region29: #{eca_attention.1} parent=27 // pred_check
          %p127 = pneg %p30
        $region30: #{eca_attention.1} parent=27 // pred_check_branch
          %129 = sbr.rel (%p127) target = $region32
        $region31: #{eca_attention.1} parent=27 // pred_region
          %130 = dma.done [#allocation3], 16
        $region32: #{eca_attention.1} parent=27 // pred_fallthru
          _
        %131 = sfence
        %p132 = pneg %p30
        %p133 = pneg %p27
        %p134 = scmp.lt.s32.totalorder %s14, 1
        %s135 = scalar_select %p134, %s14, 1
        %s136 = smul.addr %s135, 8
        %s137 = smul.addr %s136, 8
        %s138 = scalar_lea.vmem %s1, %s137
        %p139 = pneg %p56
        %p140 = pneg %p53
        %p141 = pneg %p82
        %p142 = pneg %p79
        %p143 = scmp.lt.s32.totalorder %s14, 1
        %s144 = scalar_select %p143, %s14, 1
        %s145 = smul.addr %s144, 8
        %s146 = smul.addr %s145, 8
        %s147 = scalar_lea.vmem %s2, %s146
        %p148 = scmp.lt.s32.totalorder %s14, 1
        %s149 = scalar_select %p148, %s14, 1
        %s150 = smul.addr %s149, 8
        %s151 = smul.addr %s150, 8
        %s152 = scalar_lea.vmem %s1, %s151
        %p153 = scmp.lt.s32.totalorder %s14, 1
        %s154 = scalar_select %p153, %s14, 1
        %s155 = smul.addr %s154, 8
        %s156 = smul.addr %s155, 8
        %s157 = scalar_lea.vmem %s2, %s156
        %v158 = vld [vmem:[%s152] sm:$0xff]
        %v159 = vld [vmem:[%s152 + $0x8] sm:$0xff]
        %v160 = vld [vmem:[%s152 + $0x10] sm:$0xff]
        %v161 = vld [vmem:[%s152 + $0x18] sm:$0xff]
        %v162 = vld [vmem:[%s152 + $0x20] sm:$0xff]
        %v163 = vld [vmem:[%s152 + $0x28] sm:$0xff]
        %v164 = vld [vmem:[%s152 + $0x30] sm:$0xff]
        %v165 = vld [vmem:[%s152 + $0x38] sm:$0xff]
        %v166 = vadd.f32 %v158, %v159
        %167 = vadd.xlane.f32.xlu0 %v166
        %v168 = vpop.xlane.xlu0 %167
        %v169 = vadd.f32 %v160, %v161
        %170 = vadd.xlane.f32.xlu0 %v169
        %v171 = vpop.xlane.xlu0 %170
        %v172 = vadd.f32 %v162, %v163
        %173 = vadd.xlane.f32.xlu0 %v172
        %v174 = vpop.xlane.xlu0 %173
        %v175 = vadd.f32 %v164, %v165
        %176 = vadd.xlane.f32.xlu0 %v175
        %v177 = vpop.xlane.xlu0 %176
        %v178 = vmul.f32 %v168, 0.00390625
        %v179 = vmul.f32 %v171, 0.00390625
        %v180 = vmul.f32 %v174, 0.00390625
        %v181 = vmul.f32 %v177, 0.00390625
        %v182 = vlaneseq
        %v183 = vand.u32 %v182, 127
        %s184 = sld [smem:[#allocation2]]
        %v189 = vlaneseq
        %v190 = vshrl.u32 %v189, 7
        %v191 = vsub.s32 %v183, %v190
        %v192 = vrot.slane %v178, %v191
        %v193 = vadd.s32 %v183, 4294967288
        %v194 = vlaneseq
        %v195 = vshrl.u32 %v194, 7
        %v196 = vsub.s32 %v193, %v195
        %v197 = vrot.slane %v179, %v196
        %vm198 = vcmask 130112
        %v199 = vsel %vm198, %v197, %v192
        %v200 = vadd.s32 %v183, 4294967280
        %v201 = vlaneseq
        %v202 = vshrl.u32 %v201, 7
        %v203 = vsub.s32 %v200, %v202
        %v204 = vrot.slane %v180, %v203
        %vm205 = vcmask 195712
        %v206 = vsel %vm205, %v204, %v199
        %v207 = vadd.s32 %v183, 4294967272
        %v208 = vlaneseq
        %v209 = vshrl.u32 %v208, 7
        %v210 = vsub.s32 %v207, %v209
        %v211 = vrot.slane %v181, %v210
        %vm212 = vcmask 261312
        %v213 = vsel %vm212, %v211, %v206
        %vm215 = vcmask 1047808
        %216 = vrot.lane.b32.xlu0 %v213, 32
        %v217 = vpop.permute.xlu0 %216
        %v218 = vsel %vm215, %v217, %v213
        %219 = vrot.lane.b32.xlu0 %v218, 32
        %v220 = vpop.permute.xlu0 %219
        %v221 = vsel %vm215, %v220, %v213
        %v222 = vadd.s32 %v183, 4294967295
        %vm223 = vcmp.ge.s32.totalorder %v222, 0
        %vm224 = vcmp.lt.s32.totalorder %v222, 32
        %vm225 = vmand %vm223, %vm224
        %227 = vrot.lane.b32.xlu0 %v221, 97
        %v228 = vpop.permute.xlu0 %227
        %v230 = vsel %vm225, %v228, 0.0
        %v231 = vstv %s184
        %v232 = vmul.f32 %v231, %v230
        %v233 = vadd.f32 %v232, 0.0
        %s234 = sld [smem:[#allocation2 + $0x1]]
        %v235 = vstv %s234
        %v236 = vmul.f32 %v235, %v178
        %v237 = vmul.f32 %v235, %v179
        %v238 = vmul.f32 %v235, %v180
        %v239 = vmul.f32 %v235, %v181
        %v244 = vlaneseq
        %v245 = vshrl.u32 %v244, 7
        %v246 = vsub.s32 %v183, %v245
        %v247 = vrot.slane %v236, %v246
        %v248 = vlaneseq
        %v249 = vshrl.u32 %v248, 7
        %v250 = vsub.s32 %v193, %v249
        %v251 = vrot.slane %v237, %v250
        %v252 = vsel %vm198, %v251, %v247
        %v253 = vlaneseq
        %v254 = vshrl.u32 %v253, 7
        %v255 = vsub.s32 %v200, %v254
        %v256 = vrot.slane %v238, %v255
        %v257 = vsel %vm205, %v256, %v252
        %v258 = vlaneseq
        %v259 = vshrl.u32 %v258, 7
        %v260 = vsub.s32 %v207, %v259
        %v261 = vrot.slane %v239, %v260
        %v262 = vsel %vm212, %v261, %v257
        %v264 = vadd.f32 %v233, %v262
        %s265 = sld [smem:[#allocation2 + $0x2]]
        %v266 = vadd.s32 %v183, 1
        %vm267 = vcmp.ge.s32.totalorder %v266, 0
        %vm268 = vcmp.lt.s32.totalorder %v266, 32
        %vm269 = vmand %vm267, %vm268
        %270 = vrot.lane.b32.xlu0 %v221, 127
        %v271 = vpop.permute.xlu0 %270
        %v273 = vsel %vm269, %v271, 0.0
        %v274 = vstv %s265
        %v275 = vmul.f32 %v274, %v273
        %v276 = vadd.f32 %v264, %v275
        %v277 = vadd.f32 %v276, 3.0
        %v278 = vmax.f32 %v277, 0.0
        %v279 = vmin.f32 %v278, 6.0
        %v280 = vmul.f32 %v279, 0.16666667
        %v281 = vlaneseq
        %v282 = vshrl.u32 %v281, 7
        %v283 = vsub.s32 0, %v282
        %v284 = vrot.slane %v280, %v283
        %286 = vbcast.lane.b32.xlu0 %v284, 256
        %v287 = vpop.permute.xlu0 %286
        %s289 = sor.u32 256, 8
        %290 = vbcast.lane.b32.xlu0 %v284, %s289
        %v291 = vpop.permute.xlu0 %290
        %s293 = sor.u32 256, 16
        %294 = vbcast.lane.b32.xlu0 %v284, %s293
        %v295 = vpop.permute.xlu0 %294
        %s297 = sor.u32 256, 24
        %298 = vbcast.lane.b32.xlu0 %v284, %s297
        %v299 = vpop.permute.xlu0 %298
        %v300 = vmul.f32 %v158, %v287
        %v301 = vmul.f32 %v159, %v287
        %v302 = vmul.f32 %v160, %v291
        %v303 = vmul.f32 %v161, %v291
        %v304 = vmul.f32 %v162, %v295
        %v305 = vmul.f32 %v163, %v295
        %v306 = vmul.f32 %v164, %v299
        %v307 = vmul.f32 %v165, %v299
        %308 = vst [vmem:[%s157] sm:$0xff] %v300
        %309 = vst [vmem:[%s157 + $0x8] sm:$0xff] %v301
        %310 = vst [vmem:[%s157 + $0x10] sm:$0xff] %v302
        %311 = vst [vmem:[%s157 + $0x18] sm:$0xff] %v303
        %312 = vst [vmem:[%s157 + $0x20] sm:$0xff] %v304
        %313 = vst [vmem:[%s157 + $0x28] sm:$0xff] %v305
        %314 = vst [vmem:[%s157 + $0x30] sm:$0xff] %v306
        %315 = vst [vmem:[%s157 + $0x38] sm:$0xff] %v307
        %p316 = scmp.lt.s32.totalorder %s14, 1
        %s317 = scalar_select %p316, %s14, 1
        %s318 = smul.addr %s317, 8
        %s319 = smul.addr %s318, 8
        %s320 = scalar_lea.vmem %s2, %s319
        // Predicated region
        $region33: #{eca_attention.1} parent=27 // pred_check
          %p321 = pneg %p79
        $region34: #{eca_attention.1} parent=27 // pred_check_branch
          %323 = sbr.rel (%p321) target = $region36
        $region35: #{eca_attention.1} parent=27 // pred_region
          _
        $region36: #{eca_attention.1} parent=27 // pred_fallthru
          _
      $region28: #{eca_attention.1} parent=5 // pred_fallthru
        _
      %p324 = scmp.le.s32.totalorder 2, %s9
      // Predicated region
      $region37: #{eca_attention.1} parent=5 // pred_check
        %p325 = pneg %p324
      $region38: #{eca_attention.1} parent=5 // pred_check_branch
        %327 = sbr.rel (%p325) target = $region40
      $region39: #{eca_attention.1} parent=5 // pred_region
        %s328 = ssub.s32 %s9, 2
        // Predicated region
        $region41: #{eca_attention.1} parent=39 // pred_check
          %p329 = pneg %p85
        $region42: #{eca_attention.1} parent=39 // pred_check_branch
          %331 = sbr.rel (%p329) target = $region44
        $region43: #{eca_attention.1} parent=39 // pred_region
          %p332 = scmp.lt.s32.totalorder %s15, 1
          %s333 = scalar_select %p332, %s15, 1
          %s334 = smul.addr %s333, 8
          %s335 = smul.addr %s334, 8
          %s336 = scalar_lea.vmem %s2, %s335
        $region44: #{eca_attention.1} parent=39 // pred_fallthru
          _
      $region40: #{eca_attention.1} parent=5 // pred_fallthru
        _
    $region6: #{eca_attention.1} parent=1 // loop_footer
      %s13 = sadd.s32 1, %s9
    $region7: #{eca_attention.1} parent=1 // loop_footer_branch
      %8 = sbr.rel target = $region3
    $region8: #{eca_attention.1} parent=1 // loop_exit
      _
    %337 = vsyncpa [#allocation3], 1
    %s338 = scalar_lea.sflag [#allocation3], 1
    %339 = vsyncpa %s338, 1

</llo_original>
